<compile_context>
chip_gen: v6e
topology: v6e:2x2x1
jax: 0.10.0
libtpu: 0.0.40
codegen_flags: <defaults>
</compile_context>

<pallas_src>
import math

import jax
import jax.numpy as jnp
from jax.experimental import pallas as pl
from jax.experimental.pallas import tpu as pltpu

_LANE = 128


def _gcn2_single_block_kernel(alpha_ref, adj_ref, x_ref, feat_ref, o_ref):
    """Whole problem in one VMEM block: one MXU matmul + fused residual mix."""
    alpha = alpha_ref[0]
    acc = jnp.dot(adj_ref[...], x_ref[...], preferred_element_type=jnp.float32)
    mixed = (1.0 - alpha) * acc + alpha * feat_ref[...].astype(jnp.float32)
    o_ref[...] = mixed.astype(o_ref.dtype)


def _gcn2_tiled_kernel(alpha_ref, adj_ref, x_ref, feat_ref, o_ref):
    """Tiled matmul (adj @ x) accumulated over k directly into the resident f32
    output block, fused with the residual mix at the last k step."""
    k = pl.program_id(2)

    @pl.when(k == 0)
    def _():
        o_ref[...] = jnp.zeros_like(o_ref)

    o_ref[...] += jnp.dot(
        adj_ref[...], x_ref[...], preferred_element_type=jnp.float32
    )

    @pl.when(k == pl.num_programs(2) - 1)
    def _():
        alpha = alpha_ref[0]
        o_ref[...] = (1.0 - alpha) * o_ref[...] + alpha * feat_ref[...].astype(
            jnp.float32
        )


def _pick_tile(dim, target, align=_LANE):
    """Largest multiple-of-`align` divisor of `dim` that is <= max(target, align).
    `dim` must itself be a multiple of `align`."""
    target = max(align, min(target, dim))
    t = (target // align) * align
    while t > align:
        if dim % t == 0:
            return t
        t -= align
    return align


def _pad_to(x, rows, cols):
    r, c = x.shape
    if r == rows and c == cols:
        return x
    return jnp.pad(x, ((0, rows - r), (0, cols - c)))


def _device_kind():
    try:
        return jax.devices()[0].device_kind.lower()
    except Exception:  # pragma: no cover - defensive
        return ""


def graph_convolution2_forward(
    feature,
    x,
    adj,
    alpha,
    *,
    tm=512,
    tn=None,
    tk=1024,
    compute_dtype=jnp.bfloat16,
    force_tiled=False,
    vmem_budget_bytes=24 * 1024 * 1024,
):
    """output = (1 - alpha) * (adj @ x) + alpha * feature, computed in Pallas.

    compute_dtype: dtype for adj/x before the matmul (default bfloat16; pass None
    to keep the input dtype).  Accumulation is always f32; feature and the output
    stay float32.  Note: casting the row-normalized adjacency to bf16 perturbs
    row sums at ~1e-3 relative error (acceptable for GCN training).
    """
    N, F = x.shape
    assert adj.shape == (N, N)
    assert feature.shape == (N, F)
    out_dtype = jnp.float32

    if compute_dtype is not None:
        adj = adj.astype(compute_dtype)
        x = x.astype(compute_dtype)
    feature = feature.astype(jnp.float32)

    alpha_arr = jnp.asarray([alpha], dtype=jnp.float32)

    adj_item = jnp.dtype(adj.dtype).itemsize
    x_item = jnp.dtype(x.dtype).itemsize

    # ---- small-problem fast path ------------------------------------------------
    # One VMEM block, one MXU matmul, zero pipeline/epilogue overhead.  On v7x
    # (2 TensorCores/chip) prefer the tiled launch (>= 2 parallel i-blocks) once
    # N is large enough to split, hence the tighter N cap there.
    fast_n_cap = 512 if "v7" in _device_kind() else 1024
    resident_bytes = 2 * (N * N * adj_item + N * F * (x_item + 4 + 4))
    if (not force_tiled) and N <= fast_n_cap and resident_bytes <= (12 << 20):
        return pl.pallas_call(
            _gcn2_single_block_kernel,
            out_shape=jax.ShapeDtypeStruct((N, F), out_dtype),
            grid_spec=pltpu.PrefetchScalarGridSpec(
                num_scalar_prefetch=1,  # alpha lands in SMEM
                grid=(1,),
                in_specs=[
                    pl.BlockSpec((N, N), lambda i, a: (0, 0)),  # adj
                    pl.BlockSpec((N, F), lambda i, a: (0, 0)),  # input
                    pl.BlockSpec((N, F), lambda i, a: (0, 0)),  # feature
                ],
                out_specs=pl.BlockSpec((N, F), lambda i, a: (0, 0)),
            ),
            compiler_params=pltpu.CompilerParams(
                dimension_semantics=("arbitrary",)
            ),
        )(alpha_arr, adj, x, feature)

    # ---- tiled path --------------------------------------------------------------
    # Pad N, F to multiples of 128 so every tile is lane/sublane aligned and no
    # full-dimension fallback tile can blow the VMEM budget.  Zero padding is
    # exact: padded k-columns contribute nothing, padded rows/cols are sliced off.
    N_p = ((N + _LANE - 1) // _LANE) * _LANE
    F_p = ((F + _LANE - 1) // _LANE) * _LANE
    adj_p = _pad_to(adj, N_p, N_p)
    x_p = _pad_to(x, N_p, F_p)
    feat_p = _pad_to(feature, N_p, F_p)

    # tn = F (one j block) so the dominant N^2 adj stream is read from HBM exactly
    # once, unless the VMEM budget forces a smaller tile below.
    tn = F_p if tn is None else _pick_tile(F_p, tn)
    tm = _pick_tile(N_p, tm)
    tk = _pick_tile(N_p, tk)

    # Megacore (v7x): guarantee >= 2 i-blocks on a "parallel" axis when N allows.
    if N_p // tm < 2 and N_p >= 2 * _LANE:
        tm = _pick_tile(N_p, N_p // 2)

    def footprint(tm_, tk_, tn_):
        return 2 * (
            tm_ * tk_ * adj_item      # adj tiles (double-buffered)
            + tk_ * tn_ * x_item      # x tiles
            + tm_ * tn_ * 4           # feature tiles (f32)
            + tm_ * tn_ * 4           # resident f32 output tile
        )

    # Fit the VMEM budget: shrink tk first (only adds grid steps), then tm
    # (re-streams x), and only then tn (re-streams the dominant N^2 adj).
    while footprint(tm, tk, tn) > vmem_budget_bytes:
        if tk > _LANE:
            tk = _pick_tile(N_p, tk // 2)
        elif tm > _LANE:
            tm = _pick_tile(N_p, tm // 2)
        elif tn > _LANE:
            tn = _pick_tile(F_p, tn // 2)
        else:
            break

    grid = (N_p // tm, F_p // tn, N_p // tk)  # reduction axis (k) innermost

    fp = footprint(tm, tk, tn)
    if fp > (12 << 20):
        # Above the v5e 16 MiB scoped-VMEM default: raise the limit explicitly
        # (capped at 48 MiB, still below v7x's 64 MiB physical VMEM).
        vmem_limit = int(min(48 << 20, max(32 << 20, fp + (8 << 20))))
        compiler_params = pltpu.CompilerParams(
            dimension_semantics=("parallel", "parallel", "arbitrary"),
            vmem_limit_bytes=vmem_limit,
        )
    else:
        compiler_params = pltpu.CompilerParams(
            dimension_semantics=("parallel", "parallel", "arbitrary")
        )

    # TODO(synk): feature is only consumed in the last-k epilogue and its block
    # index is k-invariant; a pipeline_mode=pl.Buffered(1) spec would reclaim one
    # tm*tn*4 VMEM buffer on v7x.
    out_p = pl.pallas_call(
        _gcn2_tiled_kernel,
        out_shape=jax.ShapeDtypeStruct((N_p, F_p), out_dtype),
        grid_spec=pltpu.PrefetchScalarGridSpec(
            num_scalar_prefetch=1,  # alpha lands in SMEM
            grid=grid,
            in_specs=[
                pl.BlockSpec((tm, tk), lambda i, j, k, a: (i, k)),  # adj tile
                pl.BlockSpec((tk, tn), lambda i, j, k, a: (k, j)),  # input tile
                pl.BlockSpec((tm, tn), lambda i, j, k, a: (i, j)),  # feature tile
            ],
            out_specs=pl.BlockSpec((tm, tn), lambda i, j, k, a: (i, j)),
        ),
        compiler_params=compiler_params,
    )(alpha_arr, adj_p, x_p, feat_p)

    if (N_p, F_p) != (N, F):
        out_p = out_p[:N, :F]
    return out_p


if __name__ == "__main__":
    key = jax.random.PRNGKey(0)
    k_adj, k_x, k_feat, k_w = jax.random.split(key, 4)

    # Small, Pallas-tile-friendly shapes: N nodes, F features.
    N, F = 256, 128
    in_features = out_features = F
    alpha = 0.1

    # Deterministic parameter init mirroring reset_parameters (unused in forward).
    stdv = 1.0 / math.sqrt(out_features)
    weight = jax.random.uniform(
        k_w, (in_features, out_features), jnp.float32, minval=-stdv, maxval=stdv
    )

    adj = jax.random.uniform(k_adj, (N, N), jnp.float32)
    # Sparsify + row-normalize to mimic a typical GCN adjacency (dense storage).
    adj = jnp.where(adj > 0.9, adj, 0.0)
    adj = adj / (jnp.sum(adj, axis=1, keepdims=True) + 1e-6)

    x = jax.random.normal(k_x, (N, F), jnp.float32)
    feature = jax.random.normal(k_feat, (N, F), jnp.float32)

    # Reference in plain JAX (f32).
    ref = (1.0 - alpha) * (adj @ x) + alpha * feature

    # 1) Default path (bf16 adj/x, f32 accumulation): small graph -> single block.
    out_fast = jax.block_until_ready(
        graph_convolution2_forward(feature, x, adj, alpha)
    )
    assert out_fast.shape == (N, F)
    assert jnp.allclose(out_fast, ref, atol=5e-2, rtol=5e-2), "fast path mismatch"

    # 2) Tiled path in full f32 (exact): exercises aligned tiling + multi-step k
    #    accumulation into the resident output block.
    out_tiled_f32 = jax.block_until_ready(
        graph_convolution2_forward(
            feature, x, adj, alpha,
            force_tiled=True, compute_dtype=None, tm=128, tn=128, tk=128,
        )
    )
    assert jnp.allclose(out_tiled_f32, ref, atol=1e-4, rtol=1e-4), "f32 tiled mismatch"

    # 3) Tiled default (bf16) on a non-aligned shape: exercises wrapper padding,
    #    VMEM budget fitting and the >=2 i-block megacore split.
    N2, F2 = 200, 96
    adj2 = jax.random.uniform(k_adj, (N2, N2), jnp.float32)
    adj2 = jnp.where(adj2 > 0.9, adj2, 0.0)
    adj2 = adj2 / (jnp.sum(adj2, axis=1, keepdims=True) + 1e-6)
    x2 = jax.random.normal(k_x, (N2, F2), jnp.float32)
    feat2 = jax.random.normal(k_feat, (N2, F2), jnp.float32)
    ref2 = (1.0 - alpha) * (adj2 @ x2) + alpha * feat2

    out2 = jax.block_until_ready(
        graph_convolution2_forward(feat2, x2, adj2, alpha, force_tiled=True)
    )
    assert out2.shape == (N2, F2)
    assert jnp.allclose(out2, ref2, atol=5e-2, rtol=5e-2), "padded tiled mismatch"

    print("KERNEL_OK")
</pallas_src>

<mosaic_0001>
module attributes {stable_mosaic.version = 11 : i64} {
  func.func @_gcn2_single_block_kernel(%arg0: i32, %arg1: memref<1xf32, #tpu.memory_space<smem>>, %arg2: memref<256x256xbf16, #tpu.memory_space<vmem>>, %arg3: memref<256x128xbf16, #tpu.memory_space<vmem>>, %arg4: memref<256x128xf32, #tpu.memory_space<vmem>>, %arg5: memref<256x128xf32, #tpu.memory_space<vmem>>) attributes {dimension_semantics = [#tpu.dimension_semantics<arbitrary>], iteration_bounds = array<i64: 1>, scalar_prefetch = 1 : i64, scratch_operands = 0 : i64, tpu.core_type = #tpu.core_type<tc>, window_params = [{pipeline_mode = #tpu.pipeline_mode<synchronous>, transform_indices = @transform_0, window_bounds = array<i64: 256, 256>}, {pipeline_mode = #tpu.pipeline_mode<synchronous>, transform_indices = @transform_1, window_bounds = array<i64: 256, 128>}, {pipeline_mode = #tpu.pipeline_mode<synchronous>, transform_indices = @transform_2, window_bounds = array<i64: 256, 128>}, {pipeline_mode = #tpu.pipeline_mode<synchronous>, transform_indices = @transform_3, window_bounds = array<i64: 256, 128>}]} {
    %c0 = arith.constant 0 : index
    %0 = memref.load %arg1[%c0] : memref<1xf32, #tpu.memory_space<smem>>
    %c0_0 = arith.constant 0 : index
    %c0_1 = arith.constant 0 : index
    %1 = vector.load %arg2[%c0_0, %c0_1] : memref<256x256xbf16, #tpu.memory_space<vmem>>, vector<256x256xbf16>
    %c0_2 = arith.constant 0 : index
    %c0_3 = arith.constant 0 : index
    %2 = vector.load %arg3[%c0_2, %c0_3] : memref<256x128xbf16, #tpu.memory_space<vmem>>, vector<256x128xbf16>
    %cst = arith.constant dense<0.000000e+00> : vector<256x128xf32>
    %3 = tpu.matmul %1, %2, %cst {dimension_numbers = #tpu.dot_dimension_numbers<[1], [0], [0], [1], [0, 0, 1, 1], [], []>} : vector<256x256xbf16>, vector<256x128xbf16>, vector<256x128xf32> -> vector<256x128xf32>
    %cst_4 = arith.constant 1.000000e+00 : f32
    %4 = arith.subf %cst_4, %0 : f32
    %5 = vector.broadcast %4 : f32 to vector<256x128xf32>
    %6 = arith.mulf %5, %3 : vector<256x128xf32>
    %c0_5 = arith.constant 0 : index
    %c0_6 = arith.constant 0 : index
    %7 = vector.load %arg4[%c0_5, %c0_6] : memref<256x128xf32, #tpu.memory_space<vmem>>, vector<256x128xf32>
    %8 = vector.broadcast %0 : f32 to vector<256x128xf32>
    %9 = arith.mulf %8, %7 : vector<256x128xf32>
    %10 = arith.addf %6, %9 : vector<256x128xf32>
    %c0_7 = arith.constant 0 : index
    %c0_8 = arith.constant 0 : index
    %11 = vector.load %arg5[%c0_7, %c0_8] : memref<256x128xf32, #tpu.memory_space<vmem>>, vector<256x128xf32>
    tpu.vector_store %arg5[%c0_7, %c0_8], %10 {strides = array<i32>} : memref<256x128xf32, #tpu.memory_space<vmem>>, vector<256x128xf32>,
    return
  }
  func.func @transform_0(%arg0: i32, %arg1: memref<1xf32, #tpu.memory_space<smem>>) -> (i32, i32) {
    %c0_i32 = arith.constant 0 : i32
    %c0_i32_0 = arith.constant 0 : i32
    %c0_i32_1 = arith.constant 0 : i32
    return %c0_i32, %c0_i32_0 : i32, i32
  }
  func.func @transform_1(%arg0: i32, %arg1: memref<1xf32, #tpu.memory_space<smem>>) -> (i32, i32) {
    %c0_i32 = arith.constant 0 : i32
    %c0_i32_0 = arith.constant 0 : i32
    %c0_i32_1 = arith.constant 0 : i32
    return %c0_i32, %c0_i32_0 : i32, i32
  }
  func.func @transform_2(%arg0: i32, %arg1: memref<1xf32, #tpu.memory_space<smem>>) -> (i32, i32) {
    %c0_i32 = arith.constant 0 : i32
    %c0_i32_0 = arith.constant 0 : i32
    %c0_i32_1 = arith.constant 0 : i32
    return %c0_i32, %c0_i32_0 : i32, i32
  }
  func.func @transform_3(%arg0: i32, %arg1: memref<1xf32, #tpu.memory_space<smem>>) -> (i32, i32) {
    %c0_i32 = arith.constant 0 : i32
    %c0_i32_0 = arith.constant 0 : i32
    %c0_i32_1 = arith.constant 0 : i32
    return %c0_i32, %c0_i32_0 : i32, i32
  }
}

</mosaic_0001>

<llo_original>
// kernel: tpu_custom_call.1
$region0: #{tpu_custom_call.1}
  #allocation0 [shape = 'u32[]', space=smem, size = 0x4, offset = 0x4, fixed_abs, tag = 'smem constant byte address 0x4 - core index']
  #allocation1 [shape = 'u32[144,128]{1,0:T(1,128)}', space=vmem, size = 0x12000, scoped, tag = 'internal scratch']
  #allocation2 [shape = 's32[1]{0}', space=sflag, size = 0x4, scoped, tag = 'scoped memory for tpu_custom_call.1']
  #allocation3 [shape = 'f32[1]{0:T(128)S(6)}', space=smem, size = 0x200, scoped, tag = 'prefetched SMEM operand 0']
  %s0 = inlined_call_operand.<no memory space> [shape: f32[1], index: 0, kind: input, shape index: {}]
  %s1 = inlined_call_operand.hbm [shape: bf16[256,256], index: 1, kind: input, shape index: {}]
  %s2 = inlined_call_operand.hbm [shape: bf16[256,128], index: 2, kind: input, shape index: {}]
  %s3 = inlined_call_operand.hbm [shape: f32[256,128], index: 3, kind: input, shape index: {}]
  %s4 = inlined_call_operand.hbm [shape: f32[256,128], index: 4, kind: output, shape index: {}]
  %s5 = sld [smem:[#allocation0]]
  $region34: #{tpu_custom_call.1} parent=0
    _
  %s7 = ssub.s32 1, %s5
  %s8 = scalar_select 0, %s7, %s5
  %9 = sst [smem:[#allocation3]] %s0
  $region1: #{tpu_custom_call.1} parent=0
    #allocation4 [shape = 'u8[131072]{0}', space=vmem, size = 0x20000, scoped, tag = 'input window, operand 1, single buffered']
    #allocation5 [shape = 's32[1]{0}', space=sflag, size = 0x4, scoped, tag = 'scoped memory for tpu_custom_call.1']
    #allocation6 [shape = 's32[1]{0}', space=sflag, size = 0x4, scoped, tag = 'scoped memory for tpu_custom_call.1']
    #allocation7 [shape = 'u8[65536]{0}', space=vmem, size = 0x10000, scoped, tag = 'input window, operand 2, single buffered']
    #allocation8 [shape = 's32[1]{0}', space=sflag, size = 0x4, scoped, tag = 'scoped memory for tpu_custom_call.1']
    #allocation9 [shape = 'u8[131072]{0}', space=vmem, size = 0x20000, scoped, tag = 'input window, operand 3, single buffered']
    #allocation10 [shape = 'u8[131072]{0}', space=vmem, size = 0x20000, scoped, tag = 'output window, operand 0, single buffered']
    %10 = vsyncpa [#allocation5], 0
    %11 = vsyncpa [#allocation8], 0
    %12 = vsyncpa [#allocation6], 0
    // Predicated region
    $region2: #{tpu_custom_call.1} parent=1 // pred_check
      _
    $region3: #{tpu_custom_call.1} parent=1 // pred_check_branch
      %14 = sbr.rel (0) target = $region5
    $region4: #{tpu_custom_call.1} parent=1 // pred_region
      %s16 = ssub.s32 4096, 4096
      %17 = vsyncadd [#allocation5], %s16
      %s18 = sshll.u32 [#allocation4], 4
      %s19 = int_to_ptr.vmem [resolvable:$true] %s18
      %24 = dma.hbm_to_vmem [thread:$0]  %s1, 4096, %s19, [#allocation5], 128, 128, 8
    $region5: #{tpu_custom_call.1} parent=1 // pred_fallthru
      _
    // Predicated region
    $region6: #{tpu_custom_call.1} parent=1 // pred_check
      _
    $region7: #{tpu_custom_call.1} parent=1 // pred_check_branch
      %26 = sbr.rel (0) target = $region9
    $region8: #{tpu_custom_call.1} parent=1 // pred_region
      %s28 = ssub.s32 2048, 2048
      %29 = vsyncadd [#allocation8], %s28
      %s30 = sshll.u32 [#allocation7], 4
      %s31 = int_to_ptr.vmem [resolvable:$true] %s30
      %36 = dma.hbm_to_vmem [thread:$0]  %s2, 2048, %s31, [#allocation8], 64, 64, 4
    $region9: #{tpu_custom_call.1} parent=1 // pred_fallthru
      _
    // Predicated region
    $region10: #{tpu_custom_call.1} parent=1 // pred_check
      _
    $region11: #{tpu_custom_call.1} parent=1 // pred_check_branch
      %38 = sbr.rel (0) target = $region13
    $region12: #{tpu_custom_call.1} parent=1 // pred_region
      %s40 = ssub.s32 4096, 4096
      %41 = vsyncadd [#allocation8], %s40
      %s42 = sshll.u32 [#allocation9], 4
      %s43 = int_to_ptr.vmem [resolvable:$true] %s42
      %48 = dma.hbm_to_vmem [thread:$0]  %s3, 4096, %s43, [#allocation8], 128, 128, 8
    $region13: #{tpu_custom_call.1} parent=1 // pred_fallthru
      _
    // Predicated region
    $region14: #{tpu_custom_call.1} parent=1 // pred_check
      _
    $region15: #{tpu_custom_call.1} parent=1 // pred_check_branch
      %50 = sbr.rel (0) target = $region17
    $region16: #{tpu_custom_call.1} parent=1 // pred_region
      %51 = dma.done [#allocation5], 4096
    $region17: #{tpu_custom_call.1} parent=1 // pred_fallthru
      _
    // Predicated region
    $region18: #{tpu_custom_call.1} parent=1 // pred_check
      _
    $region19: #{tpu_custom_call.1} parent=1 // pred_check_branch
      %53 = sbr.rel (0) target = $region21
    $region20: #{tpu_custom_call.1} parent=1 // pred_region
      %54 = dma.done [#allocation8], 2048
    $region21: #{tpu_custom_call.1} parent=1 // pred_fallthru
      _
    // Predicated region
    $region22: #{tpu_custom_call.1} parent=1 // pred_check
      _
    $region23: #{tpu_custom_call.1} parent=1 // pred_check_branch
      %56 = sbr.rel (0) target = $region25
    $region24: #{tpu_custom_call.1} parent=1 // pred_region
      %57 = dma.done [#allocation8], 4096
    $region25: #{tpu_custom_call.1} parent=1 // pred_fallthru
      _
    %s59 = sld [smem:[#allocation3]]
    %v60 = vld [vmem:[#allocation4] sm:$0xff]
    %v61 = vld [vmem:[#allocation4 + $0x8] sm:$0xff]
    %v62 = vld [vmem:[#allocation4 + $0x10] sm:$0xff]
    %v63 = vld [vmem:[#allocation4 + $0x18] sm:$0xff]
    %v64 = vld [vmem:[#allocation4 + $0x20] sm:$0xff]
    %v65 = vld [vmem:[#allocation4 + $0x28] sm:$0xff]
    %v66 = vld [vmem:[#allocation4 + $0x30] sm:$0xff]
    %v67 = vld [vmem:[#allocation4 + $0x38] sm:$0xff]
    %v68 = vld [vmem:[#allocation4 + $0x40] sm:$0xff]
    %v69 = vld [vmem:[#allocation4 + $0x48] sm:$0xff]
    %v70 = vld [vmem:[#allocation4 + $0x50] sm:$0xff]
    %v71 = vld [vmem:[#allocation4 + $0x58] sm:$0xff]
    %v72 = vld [vmem:[#allocation4 + $0x60] sm:$0xff]
    %v73 = vld [vmem:[#allocation4 + $0x68] sm:$0xff]
    %v74 = vld [vmem:[#allocation4 + $0x70] sm:$0xff]
    %v75 = vld [vmem:[#allocation4 + $0x78] sm:$0xff]
    %v76 = vld [vmem:[#allocation4 + $0x80] sm:$0xff]
    %v77 = vld [vmem:[#allocation4 + $0x88] sm:$0xff]
    %v78 = vld [vmem:[#allocation4 + $0x90] sm:$0xff]
    %v79 = vld [vmem:[#allocation4 + $0x98] sm:$0xff]
    %v80 = vld [vmem:[#allocation4 + $0xa0] sm:$0xff]
    %v81 = vld [vmem:[#allocation4 + $0xa8] sm:$0xff]
    %v82 = vld [vmem:[#allocation4 + $0xb0] sm:$0xff]
    %v83 = vld [vmem:[#allocation4 + $0xb8] sm:$0xff]
    %v84 = vld [vmem:[#allocation4 + $0xc0] sm:$0xff]
    %v85 = vld [vmem:[#allocation4 + $0xc8] sm:$0xff]
    %v86 = vld [vmem:[#allocation4 + $0xd0] sm:$0xff]
    %v87 = vld [vmem:[#allocation4 + $0xd8] sm:$0xff]
    %v88 = vld [vmem:[#allocation4 + $0xe0] sm:$0xff]
    %v89 = vld [vmem:[#allocation4 + $0xe8] sm:$0xff]
    %v90 = vld [vmem:[#allocation4 + $0xf0] sm:$0xff]
    %v91 = vld [vmem:[#allocation4 + $0xf8] sm:$0xff]
    %v92 = vld [vmem:[#allocation7] sm:$0xf]
    %v93 = vld [vmem:[#allocation7 + $0x4] sm:$0xf]
    %v94 = vld [vmem:[#allocation7 + $0x8] sm:$0xf]
    %v95 = vld [vmem:[#allocation7 + $0xc] sm:$0xf]
    %v96 = vld [vmem:[#allocation7 + $0x10] sm:$0xf]
    %v97 = vld [vmem:[#allocation7 + $0x14] sm:$0xf]
    %v98 = vld [vmem:[#allocation7 + $0x18] sm:$0xf]
    %v99 = vld [vmem:[#allocation7 + $0x1c] sm:$0xf]
    %v100 = vld [vmem:[#allocation7 + $0x20] sm:$0xf]
    %v101 = vld [vmem:[#allocation7 + $0x24] sm:$0xf]
    %v102 = vld [vmem:[#allocation7 + $0x28] sm:$0xf]
    %v103 = vld [vmem:[#allocation7 + $0x2c] sm:$0xf]
    %v104 = vld [vmem:[#allocation7 + $0x30] sm:$0xf]
    %v105 = vld [vmem:[#allocation7 + $0x34] sm:$0xf]
    %v106 = vld [vmem:[#allocation7 + $0x38] sm:$0xf]
    %v107 = vld [vmem:[#allocation7 + $0x3c] sm:$0xf]
    %v108 = vld [vmem:[#allocation7 + $0x40] sm:$0xf]
    %v109 = vld [vmem:[#allocation7 + $0x44] sm:$0xf]
    %v110 = vld [vmem:[#allocation7 + $0x48] sm:$0xf]
    %v111 = vld [vmem:[#allocation7 + $0x4c] sm:$0xf]
    %v112 = vld [vmem:[#allocation7 + $0x50] sm:$0xf]
    %v113 = vld [vmem:[#allocation7 + $0x54] sm:$0xf]
    %v114 = vld [vmem:[#allocation7 + $0x58] sm:$0xf]
    %v115 = vld [vmem:[#allocation7 + $0x5c] sm:$0xf]
    %v116 = vld [vmem:[#allocation7 + $0x60] sm:$0xf]
    %v117 = vld [vmem:[#allocation7 + $0x64] sm:$0xf]
    %v118 = vld [vmem:[#allocation7 + $0x68] sm:$0xf]
    %v119 = vld [vmem:[#allocation7 + $0x6c] sm:$0xf]
    %v120 = vld [vmem:[#allocation7 + $0x70] sm:$0xf]
    %v121 = vld [vmem:[#allocation7 + $0x74] sm:$0xf]
    %v122 = vld [vmem:[#allocation7 + $0x78] sm:$0xf]
    %v123 = vld [vmem:[#allocation7 + $0x7c] sm:$0xf]
    %v156 = vunpack.c.l.b16 %v60
    %v157 = vunpack.c.h.b16 %v60
    %v158 = vunpack.c.l.b16 %v61
    %v159 = vunpack.c.h.b16 %v61
    %v160 = vunpack.c.l.b16 %v62
    %v161 = vunpack.c.h.b16 %v62
    %v162 = vunpack.c.l.b16 %v63
    %v163 = vunpack.c.h.b16 %v63
    %v164 = vunpack.c.l.b16 %v64
    %v165 = vunpack.c.h.b16 %v64
    %v166 = vunpack.c.l.b16 %v65
    %v167 = vunpack.c.h.b16 %v65
    %v168 = vunpack.c.l.b16 %v66
    %v169 = vunpack.c.h.b16 %v66
    %v170 = vunpack.c.l.b16 %v67
    %v171 = vunpack.c.h.b16 %v67
    %v172 = vunpack.c.l.b16 %v68
    %v173 = vunpack.c.h.b16 %v68
    %v174 = vunpack.c.l.b16 %v69
    %v175 = vunpack.c.h.b16 %v69
    %v176 = vunpack.c.l.b16 %v70
    %v177 = vunpack.c.h.b16 %v70
    %v178 = vunpack.c.l.b16 %v71
    %v179 = vunpack.c.h.b16 %v71
    %v180 = vunpack.c.l.b16 %v72
    %v181 = vunpack.c.h.b16 %v72
    %v182 = vunpack.c.l.b16 %v73
    %v183 = vunpack.c.h.b16 %v73
    %v184 = vunpack.c.l.b16 %v74
    %v185 = vunpack.c.h.b16 %v74
    %v186 = vunpack.c.l.b16 %v75
    %v187 = vunpack.c.h.b16 %v75
    %v188 = vunpack.c.l.b16 %v76
    %v189 = vunpack.c.h.b16 %v76
    %v190 = vunpack.c.l.b16 %v77
    %v191 = vunpack.c.h.b16 %v77
    %v192 = vunpack.c.l.b16 %v78
    %v193 = vunpack.c.h.b16 %v78
    %v194 = vunpack.c.l.b16 %v79
    %v195 = vunpack.c.h.b16 %v79
    %v196 = vunpack.c.l.b16 %v80
    %v197 = vunpack.c.h.b16 %v80
    %v198 = vunpack.c.l.b16 %v81
    %v199 = vunpack.c.h.b16 %v81
    %v200 = vunpack.c.l.b16 %v82
    %v201 = vunpack.c.h.b16 %v82
    %v202 = vunpack.c.l.b16 %v83
    %v203 = vunpack.c.h.b16 %v83
    %v204 = vunpack.c.l.b16 %v84
    %v205 = vunpack.c.h.b16 %v84
    %v206 = vunpack.c.l.b16 %v85
    %v207 = vunpack.c.h.b16 %v85
    %v208 = vunpack.c.l.b16 %v86
    %v209 = vunpack.c.h.b16 %v86
    %v210 = vunpack.c.l.b16 %v87
    %v211 = vunpack.c.h.b16 %v87
    %v212 = vunpack.c.l.b16 %v88
    %v213 = vunpack.c.h.b16 %v88
    %v214 = vunpack.c.l.b16 %v89
    %v215 = vunpack.c.h.b16 %v89
    %v216 = vunpack.c.l.b16 %v90
    %v217 = vunpack.c.h.b16 %v90
    %v218 = vunpack.c.l.b16 %v91
    %v219 = vunpack.c.h.b16 %v91
    %v220 = vpack.c.b16 %v158, %v156
    %v221 = vpack.c.b16 %v159, %v157
    %v222 = vpack.c.b16 %v162, %v160
    %v223 = vpack.c.b16 %v163, %v161
    %v224 = vpack.c.b16 %v166, %v164
    %v225 = vpack.c.b16 %v167, %v165
    %v226 = vpack.c.b16 %v170, %v168
    %v227 = vpack.c.b16 %v171, %v169
    %v228 = vpack.c.b16 %v174, %v172
    %v229 = vpack.c.b16 %v175, %v173
    %v230 = vpack.c.b16 %v178, %v176
    %v231 = vpack.c.b16 %v179, %v177
    %v232 = vpack.c.b16 %v182, %v180
    %v233 = vpack.c.b16 %v183, %v181
    %v234 = vpack.c.b16 %v186, %v184
    %v235 = vpack.c.b16 %v187, %v185
    %v236 = vpack.c.b16 %v190, %v188
    %v237 = vpack.c.b16 %v191, %v189
    %v238 = vpack.c.b16 %v194, %v192
    %v239 = vpack.c.b16 %v195, %v193
    %v240 = vpack.c.b16 %v198, %v196
    %v241 = vpack.c.b16 %v199, %v197
    %v242 = vpack.c.b16 %v202, %v200
    %v243 = vpack.c.b16 %v203, %v201
    %v244 = vpack.c.b16 %v206, %v204
    %v245 = vpack.c.b16 %v207, %v205
    %v246 = vpack.c.b16 %v210, %v208
    %v247 = vpack.c.b16 %v211, %v209
    %v248 = vpack.c.b16 %v214, %v212
    %v249 = vpack.c.b16 %v215, %v213
    %v250 = vpack.c.b16 %v218, %v216
    %v251 = vpack.c.b16 %v219, %v217
    %v316 = vunpack.c.l.b16 %v92
    %v317 = vunpack.c.l.b16 %v93
    %v318 = vunpack.c.l.b16 %v94
    %v319 = vunpack.c.l.b16 %v95
    %v320 = vunpack.c.l.b16 %v96
    %v321 = vunpack.c.l.b16 %v97
    %v322 = vunpack.c.l.b16 %v98
    %v323 = vunpack.c.l.b16 %v99
    %v324 = vunpack.c.l.b16 %v100
    %v325 = vunpack.c.l.b16 %v101
    %v326 = vunpack.c.l.b16 %v102
    %v327 = vunpack.c.l.b16 %v103
    %v328 = vunpack.c.l.b16 %v104
    %v329 = vunpack.c.l.b16 %v105
    %v330 = vunpack.c.l.b16 %v106
    %v331 = vunpack.c.l.b16 %v107
    %v332 = vunpack.c.l.b16 %v108
    %v333 = vunpack.c.l.b16 %v109
    %v334 = vunpack.c.l.b16 %v110
    %v335 = vunpack.c.l.b16 %v111
    %v336 = vunpack.c.l.b16 %v112
    %v337 = vunpack.c.l.b16 %v113
    %v338 = vunpack.c.l.b16 %v114
    %v339 = vunpack.c.l.b16 %v115
    %v340 = vunpack.c.l.b16 %v116
    %v341 = vunpack.c.l.b16 %v117
    %v342 = vunpack.c.l.b16 %v118
    %v343 = vunpack.c.l.b16 %v119
    %v344 = vunpack.c.l.b16 %v120
    %v345 = vunpack.c.l.b16 %v121
    %v346 = vunpack.c.l.b16 %v122
    %v347 = vunpack.c.l.b16 %v123
    %v348 = vpack.c.b16 %v317, %v316
    %v349 = vpack.c.b16 %v319, %v318
    %v350 = vpack.c.b16 %v321, %v320
    %v351 = vpack.c.b16 %v323, %v322
    %v352 = vpack.c.b16 %v325, %v324
    %v353 = vpack.c.b16 %v327, %v326
    %v354 = vpack.c.b16 %v329, %v328
    %v355 = vpack.c.b16 %v331, %v330
    %v356 = vpack.c.b16 %v333, %v332
    %v357 = vpack.c.b16 %v335, %v334
    %v358 = vpack.c.b16 %v337, %v336
    %v359 = vpack.c.b16 %v339, %v338
    %v360 = vpack.c.b16 %v341, %v340
    %v361 = vpack.c.b16 %v343, %v342
    %v362 = vpack.c.b16 %v345, %v344
    %v363 = vpack.c.b16 %v347, %v346
    %380 = vmatprep.subr.bf16.mxu0 0
    %381 = vmatpush1.bf16.msra.mxu0 %v355
    %382 = vmatprep.subr.bf16.mxu0 0
    %383 = vmatpush1.bf16.msra.mxu0 %v354
    %384 = vmatprep.subr.bf16.mxu0 0
    %385 = vmatpush1.bf16.msra.mxu0 %v353
    %386 = vmatprep.subr.bf16.mxu0 0
    %387 = vmatpush1.bf16.msra.mxu0 %v352
    %388 = vmatprep.subr.bf16.mxu0 0
    %389 = vmatpush1.bf16.msra.mxu0 %v351
    %390 = vmatprep.subr.bf16.mxu0 0
    %391 = vmatpush1.bf16.msra.mxu0 %v350
    %392 = vmatprep.subr.bf16.mxu0 0
    %393 = vmatpush1.bf16.msra.mxu0 %v349
    %394 = vmatprep.subr.bf16.mxu0 0
    %395 = vmatpush1.bf16.msra.mxu0 %v348
    %396 = vmatprep.subr.bf16.mxu0 0
    %397 = vmatpush2.bf16.msra.mxu0 %v363
    %398 = vmatprep.subr.bf16.mxu0 0
    %399 = vmatpush2.bf16.msra.mxu0 %v362
    %400 = vmatprep.subr.bf16.mxu0 0
    %401 = vmatpush2.bf16.msra.mxu0 %v361
    %402 = vmatprep.subr.bf16.mxu0 0
    %403 = vmatpush2.bf16.msra.mxu0 %v360
    %404 = vmatprep.subr.bf16.mxu0 0
    %405 = vmatpush2.bf16.msra.mxu0 %v359
    %406 = vmatprep.subr.bf16.mxu0 0
    %407 = vmatpush2.bf16.msra.mxu0 %v358
    %408 = vmatprep.subr.bf16.mxu0 0
    %409 = vmatpush2.bf16.msra.mxu0 %v357
    %410 = vmatprep.subr.bf16.mxu0 0
    %411 = vmatpush2.bf16.msra.mxu0 %v356
    %412 = vmatprep.mubr.bf16.mxu0 %v221
    %413 = vmatmul.mubr.bf16.gmra.mxu0 %v220
    %v414 = vpop.f32.mrf.mxu0
    %v415 = vadd.f32 0.0, %v414
    %v416 = vpop.f32.mrf.mxu0
    %v417 = vpop.f32.mrf.mxu0
    %v418 = vadd.f32 0.0, %v417
    %v419 = vpop.f32.mrf.mxu0
    %420 = vmatprep.mubr.bf16.mxu0 %v223
    %421 = vmatmul.mubr.bf16.gmra.mxu0 %v222
    %v422 = vpop.f32.mrf.mxu0
    %v423 = vadd.f32 0.0, %v422
    %v424 = vpop.f32.mrf.mxu0
    %v425 = vpop.f32.mrf.mxu0
    %v426 = vadd.f32 0.0, %v425
    %v427 = vpop.f32.mrf.mxu0
    %428 = vmatprep.mubr.bf16.mxu0 %v225
    %429 = vmatmul.mubr.bf16.gmra.mxu0 %v224
    %v430 = vpop.f32.mrf.mxu0
    %v431 = vadd.f32 0.0, %v430
    %v432 = vpop.f32.mrf.mxu0
    %v433 = vpop.f32.mrf.mxu0
    %v434 = vadd.f32 0.0, %v433
    %v435 = vpop.f32.mrf.mxu0
    %436 = vmatprep.mubr.bf16.mxu0 %v227
    %437 = vmatmul.mubr.bf16.gmra.mxu0 %v226
    %v438 = vpop.f32.mrf.mxu0
    %v439 = vadd.f32 0.0, %v438
    %v440 = vpop.f32.mrf.mxu0
    %v441 = vpop.f32.mrf.mxu0
    %v442 = vadd.f32 0.0, %v441
    %v443 = vpop.f32.mrf.mxu0
    %444 = vmatprep.mubr.bf16.mxu0 %v229
    %445 = vmatmul.mubr.bf16.gmra.mxu0 %v228
    %v446 = vpop.f32.mrf.mxu0
    %v447 = vadd.f32 0.0, %v446
    %v448 = vpop.f32.mrf.mxu0
    %v449 = vpop.f32.mrf.mxu0
    %v450 = vadd.f32 0.0, %v449
    %v451 = vpop.f32.mrf.mxu0
    %452 = vmatprep.mubr.bf16.mxu0 %v231
    %453 = vmatmul.mubr.bf16.gmra.mxu0 %v230
    %v454 = vpop.f32.mrf.mxu0
    %v455 = vadd.f32 0.0, %v454
    %v456 = vpop.f32.mrf.mxu0
    %v457 = vpop.f32.mrf.mxu0
    %v458 = vadd.f32 0.0, %v457
    %v459 = vpop.f32.mrf.mxu0
    %460 = vmatprep.mubr.bf16.mxu0 %v233
    %461 = vmatmul.mubr.bf16.gmra.mxu0 %v232
    %v462 = vpop.f32.mrf.mxu0
    %v463 = vadd.f32 0.0, %v462
    %v464 = vpop.f32.mrf.mxu0
    %v465 = vpop.f32.mrf.mxu0
    %v466 = vadd.f32 0.0, %v465
    %v467 = vpop.f32.mrf.mxu0
    %468 = vmatprep.mubr.bf16.mxu0 %v235
    %469 = vmatmul.mubr.bf16.gmra.mxu0 %v234
    %v470 = vpop.f32.mrf.mxu0
    %v471 = vadd.f32 0.0, %v470
    %v472 = vpop.f32.mrf.mxu0
    %v473 = vpop.f32.mrf.mxu0
    %v474 = vadd.f32 0.0, %v473
    %v475 = vpop.f32.mrf.mxu0
    %476 = vmatprep.mubr.bf16.mxu0 %v237
    %477 = vmatmul.mubr.bf16.gmra.mxu0 %v236
    %v478 = vpop.f32.mrf.mxu0
    %v479 = vadd.f32 0.0, %v478
    %v480 = vpop.f32.mrf.mxu0
    %v481 = vpop.f32.mrf.mxu0
    %v482 = vadd.f32 0.0, %v481
    %v483 = vpop.f32.mrf.mxu0
    %484 = vmatprep.mubr.bf16.mxu0 %v239
    %485 = vmatmul.mubr.bf16.gmra.mxu0 %v238
    %v486 = vpop.f32.mrf.mxu0
    %v487 = vadd.f32 0.0, %v486
    %v488 = vpop.f32.mrf.mxu0
    %v489 = vpop.f32.mrf.mxu0
    %v490 = vadd.f32 0.0, %v489
    %v491 = vpop.f32.mrf.mxu0
    %492 = vmatprep.mubr.bf16.mxu0 %v241
    %493 = vmatmul.mubr.bf16.gmra.mxu0 %v240
    %v494 = vpop.f32.mrf.mxu0
    %v495 = vadd.f32 0.0, %v494
    %v496 = vpop.f32.mrf.mxu0
    %v497 = vpop.f32.mrf.mxu0
    %v498 = vadd.f32 0.0, %v497
    %v499 = vpop.f32.mrf.mxu0
    %500 = vmatprep.mubr.bf16.mxu0 %v243
    %501 = vmatmul.mubr.bf16.gmra.mxu0 %v242
    %v502 = vpop.f32.mrf.mxu0
    %v503 = vadd.f32 0.0, %v502
    %v504 = vpop.f32.mrf.mxu0
    %v505 = vpop.f32.mrf.mxu0
    %v506 = vadd.f32 0.0, %v505
    %v507 = vpop.f32.mrf.mxu0
    %508 = vmatprep.mubr.bf16.mxu0 %v245
    %509 = vmatmul.mubr.bf16.gmra.mxu0 %v244
    %v510 = vpop.f32.mrf.mxu0
    %v511 = vadd.f32 0.0, %v510
    %v512 = vpop.f32.mrf.mxu0
    %v513 = vpop.f32.mrf.mxu0
    %v514 = vadd.f32 0.0, %v513
    %v515 = vpop.f32.mrf.mxu0
    %516 = vmatprep.mubr.bf16.mxu0 %v247
    %517 = vmatmul.mubr.bf16.gmra.mxu0 %v246
    %v518 = vpop.f32.mrf.mxu0
    %v519 = vadd.f32 0.0, %v518
    %v520 = vpop.f32.mrf.mxu0
    %v521 = vpop.f32.mrf.mxu0
    %v522 = vadd.f32 0.0, %v521
    %v523 = vpop.f32.mrf.mxu0
    %524 = vmatprep.mubr.bf16.mxu0 %v249
    %525 = vmatmul.mubr.bf16.gmra.mxu0 %v248
    %v526 = vpop.f32.mrf.mxu0
    %v527 = vadd.f32 0.0, %v526
    %v528 = vpop.f32.mrf.mxu0
    %v529 = vpop.f32.mrf.mxu0
    %v530 = vadd.f32 0.0, %v529
    %v531 = vpop.f32.mrf.mxu0
    %532 = vmatprep.mubr.bf16.mxu0 %v251
    %533 = vmatmul.mubr.bf16.gmra.mxu0 %v250
    %v534 = vpop.f32.mrf.mxu0
    %v535 = vadd.f32 0.0, %v534
    %v536 = vpop.f32.mrf.mxu0
    %v537 = vpop.f32.mrf.mxu0
    %v538 = vadd.f32 0.0, %v537
    %v539 = vpop.f32.mrf.mxu0
    %540 = vdwg.mxu0
    %s541 = ssub.f32 1.0, %s59
    %v542 = vstv %s541
    %v543 = vmul.f32 %v542, %v415
    %v544 = vmul.f32 %v542, %v418
    %v545 = vmul.f32 %v542, %v423
    %v546 = vmul.f32 %v542, %v426
    %v547 = vmul.f32 %v542, %v431
    %v548 = vmul.f32 %v542, %v434
    %v549 = vmul.f32 %v542, %v439
    %v550 = vmul.f32 %v542, %v442
    %v551 = vmul.f32 %v542, %v447
    %v552 = vmul.f32 %v542, %v450
    %v553 = vmul.f32 %v542, %v455
    %v554 = vmul.f32 %v542, %v458
    %v555 = vmul.f32 %v542, %v463
    %v556 = vmul.f32 %v542, %v466
    %v557 = vmul.f32 %v542, %v471
    %v558 = vmul.f32 %v542, %v474
    %v559 = vmul.f32 %v542, %v479
    %v560 = vmul.f32 %v542, %v482
    %v561 = vmul.f32 %v542, %v487
    %v562 = vmul.f32 %v542, %v490
    %v563 = vmul.f32 %v542, %v495
    %v564 = vmul.f32 %v542, %v498
    %v565 = vmul.f32 %v542, %v503
    %v566 = vmul.f32 %v542, %v506
    %v567 = vmul.f32 %v542, %v511
    %v568 = vmul.f32 %v542, %v514
    %v569 = vmul.f32 %v542, %v519
    %v570 = vmul.f32 %v542, %v522
    %v571 = vmul.f32 %v542, %v527
    %v572 = vmul.f32 %v542, %v530
    %v573 = vmul.f32 %v542, %v535
    %v574 = vmul.f32 %v542, %v538
    %v575 = vld [vmem:[#allocation9] sm:$0xff]
    %v576 = vld [vmem:[#allocation9 + $0x8] sm:$0xff]
    %v577 = vld [vmem:[#allocation9 + $0x10] sm:$0xff]
    %v578 = vld [vmem:[#allocation9 + $0x18] sm:$0xff]
    %v579 = vld [vmem:[#allocation9 + $0x20] sm:$0xff]
    %v580 = vld [vmem:[#allocation9 + $0x28] sm:$0xff]
    %v581 = vld [vmem:[#allocation9 + $0x30] sm:$0xff]
    %v582 = vld [vmem:[#allocation9 + $0x38] sm:$0xff]
    %v583 = vld [vmem:[#allocation9 + $0x40] sm:$0xff]
    %v584 = vld [vmem:[#allocation9 + $0x48] sm:$0xff]
    %v585 = vld [vmem:[#allocation9 + $0x50] sm:$0xff]
    %v586 = vld [vmem:[#allocation9 + $0x58] sm:$0xff]
    %v587 = vld [vmem:[#allocation9 + $0x60] sm:$0xff]
    %v588 = vld [vmem:[#allocation9 + $0x68] sm:$0xff]
    %v589 = vld [vmem:[#allocation9 + $0x70] sm:$0xff]
    %v590 = vld [vmem:[#allocation9 + $0x78] sm:$0xff]
    %v591 = vld [vmem:[#allocation9 + $0x80] sm:$0xff]
    %v592 = vld [vmem:[#allocation9 + $0x88] sm:$0xff]
    %v593 = vld [vmem:[#allocation9 + $0x90] sm:$0xff]
    %v594 = vld [vmem:[#allocation9 + $0x98] sm:$0xff]
    %v595 = vld [vmem:[#allocation9 + $0xa0] sm:$0xff]
    %v596 = vld [vmem:[#allocation9 + $0xa8] sm:$0xff]
    %v597 = vld [vmem:[#allocation9 + $0xb0] sm:$0xff]
    %v598 = vld [vmem:[#allocation9 + $0xb8] sm:$0xff]
    %v599 = vld [vmem:[#allocation9 + $0xc0] sm:$0xff]
    %v600 = vld [vmem:[#allocation9 + $0xc8] sm:$0xff]
    %v601 = vld [vmem:[#allocation9 + $0xd0] sm:$0xff]
    %v602 = vld [vmem:[#allocation9 + $0xd8] sm:$0xff]
    %v603 = vld [vmem:[#allocation9 + $0xe0] sm:$0xff]
    %v604 = vld [vmem:[#allocation9 + $0xe8] sm:$0xff]
    %v605 = vld [vmem:[#allocation9 + $0xf0] sm:$0xff]
    %v606 = vld [vmem:[#allocation9 + $0xf8] sm:$0xff]
    %v607 = vstv %s59
    %v608 = vmul.f32 %v607, %v575
    %v609 = vmul.f32 %v607, %v576
    %v610 = vmul.f32 %v607, %v577
    %v611 = vmul.f32 %v607, %v578
    %v612 = vmul.f32 %v607, %v579
    %v613 = vmul.f32 %v607, %v580
    %v614 = vmul.f32 %v607, %v581
    %v615 = vmul.f32 %v607, %v582
    %v616 = vmul.f32 %v607, %v583
    %v617 = vmul.f32 %v607, %v584
    %v618 = vmul.f32 %v607, %v585
    %v619 = vmul.f32 %v607, %v586
    %v620 = vmul.f32 %v607, %v587
    %v621 = vmul.f32 %v607, %v588
    %v622 = vmul.f32 %v607, %v589
    %v623 = vmul.f32 %v607, %v590
    %v624 = vmul.f32 %v607, %v591
    %v625 = vmul.f32 %v607, %v592
    %v626 = vmul.f32 %v607, %v593
    %v627 = vmul.f32 %v607, %v594
    %v628 = vmul.f32 %v607, %v595
    %v629 = vmul.f32 %v607, %v596
    %v630 = vmul.f32 %v607, %v597
    %v631 = vmul.f32 %v607, %v598
    %v632 = vmul.f32 %v607, %v599
    %v633 = vmul.f32 %v607, %v600
    %v634 = vmul.f32 %v607, %v601
    %v635 = vmul.f32 %v607, %v602
    %v636 = vmul.f32 %v607, %v603
    %v637 = vmul.f32 %v607, %v604
    %v638 = vmul.f32 %v607, %v605
    %v639 = vmul.f32 %v607, %v606
    %v640 = vadd.f32 %v543, %v608
    %v641 = vadd.f32 %v544, %v609
    %v642 = vadd.f32 %v545, %v610
    %v643 = vadd.f32 %v546, %v611
    %v644 = vadd.f32 %v547, %v612
    %v645 = vadd.f32 %v548, %v613
    %v646 = vadd.f32 %v549, %v614
    %v647 = vadd.f32 %v550, %v615
    %v648 = vadd.f32 %v551, %v616
    %v649 = vadd.f32 %v552, %v617
    %v650 = vadd.f32 %v553, %v618
    %v651 = vadd.f32 %v554, %v619
    %v652 = vadd.f32 %v555, %v620
    %v653 = vadd.f32 %v556, %v621
    %v654 = vadd.f32 %v557, %v622
    %v655 = vadd.f32 %v558, %v623
    %v656 = vadd.f32 %v559, %v624
    %v657 = vadd.f32 %v560, %v625
    %v658 = vadd.f32 %v561, %v626
    %v659 = vadd.f32 %v562, %v627
    %v660 = vadd.f32 %v563, %v628
    %v661 = vadd.f32 %v564, %v629
    %v662 = vadd.f32 %v565, %v630
    %v663 = vadd.f32 %v566, %v631
    %v664 = vadd.f32 %v567, %v632
    %v665 = vadd.f32 %v568, %v633
    %v666 = vadd.f32 %v569, %v634
    %v667 = vadd.f32 %v570, %v635
    %v668 = vadd.f32 %v571, %v636
    %v669 = vadd.f32 %v572, %v637
    %v670 = vadd.f32 %v573, %v638
    %v671 = vadd.f32 %v574, %v639
    %672 = vst [vmem:[#allocation10] sm:$0xff] %v640
    %673 = vst [vmem:[#allocation10 + $0x8] sm:$0xff] %v641
    %674 = vst [vmem:[#allocation10 + $0x10] sm:$0xff] %v642
    %675 = vst [vmem:[#allocation10 + $0x18] sm:$0xff] %v643
    %676 = vst [vmem:[#allocation10 + $0x20] sm:$0xff] %v644
    %677 = vst [vmem:[#allocation10 + $0x28] sm:$0xff] %v645
    %678 = vst [vmem:[#allocation10 + $0x30] sm:$0xff] %v646
    %679 = vst [vmem:[#allocation10 + $0x38] sm:$0xff] %v647
    %680 = vst [vmem:[#allocation10 + $0x40] sm:$0xff] %v648
    %681 = vst [vmem:[#allocation10 + $0x48] sm:$0xff] %v649
    %682 = vst [vmem:[#allocation10 + $0x50] sm:$0xff] %v650
    %683 = vst [vmem:[#allocation10 + $0x58] sm:$0xff] %v651
    %684 = vst [vmem:[#allocation10 + $0x60] sm:$0xff] %v652
    %685 = vst [vmem:[#allocation10 + $0x68] sm:$0xff] %v653
    %686 = vst [vmem:[#allocation10 + $0x70] sm:$0xff] %v654
    %687 = vst [vmem:[#allocation10 + $0x78] sm:$0xff] %v655
    %688 = vst [vmem:[#allocation10 + $0x80] sm:$0xff] %v656
    %689 = vst [vmem:[#allocation10 + $0x88] sm:$0xff] %v657
    %690 = vst [vmem:[#allocation10 + $0x90] sm:$0xff] %v658
    %691 = vst [vmem:[#allocation10 + $0x98] sm:$0xff] %v659
    %692 = vst [vmem:[#allocation10 + $0xa0] sm:$0xff] %v660
    %693 = vst [vmem:[#allocation10 + $0xa8] sm:$0xff] %v661
    %694 = vst [vmem:[#allocation10 + $0xb0] sm:$0xff] %v662
    %695 = vst [vmem:[#allocation10 + $0xb8] sm:$0xff] %v663
    %696 = vst [vmem:[#allocation10 + $0xc0] sm:$0xff] %v664
    %697 = vst [vmem:[#allocation10 + $0xc8] sm:$0xff] %v665
    %698 = vst [vmem:[#allocation10 + $0xd0] sm:$0xff] %v666
    %699 = vst [vmem:[#allocation10 + $0xd8] sm:$0xff] %v667
    %700 = vst [vmem:[#allocation10 + $0xe0] sm:$0xff] %v668
    %701 = vst [vmem:[#allocation10 + $0xe8] sm:$0xff] %v669
    %702 = vst [vmem:[#allocation10 + $0xf0] sm:$0xff] %v670
    %703 = vst [vmem:[#allocation10 + $0xf8] sm:$0xff] %v671
    // Predicated region
    $region26: #{tpu_custom_call.1} parent=1 // pred_check
      _
    $region27: #{tpu_custom_call.1} parent=1 // pred_check_branch
      %705 = sbr.rel (0) target = $region29
    $region28: #{tpu_custom_call.1} parent=1 // pred_region
      %s707 = ssub.s32 4096, 4096
      %708 = vsyncadd [#allocation6], %s707
      %s709 = sshll.u32 [#allocation10], 4
      %s710 = int_to_ptr.vmem [resolvable:$true] %s709
      %715 = dma.vmem_to_hbm [thread:$0]  %s710, 4096, %s4, [#allocation6], 128, 128, 8
    $region29: #{tpu_custom_call.1} parent=1 // pred_fallthru
      _
    // Predicated region
    $region30: #{tpu_custom_call.1} parent=1 // pred_check
      _
    $region31: #{tpu_custom_call.1} parent=1 // pred_check_branch
      %717 = sbr.rel (0) target = $region33
    $region32: #{tpu_custom_call.1} parent=1 // pred_region
      %718 = dma.done [#allocation6], 4096
    $region33: #{tpu_custom_call.1} parent=1 // pred_fallthru
      _
    %719 = vsyncpa [#allocation5], 1
    %720 = vsyncpa [#allocation8], 1
    %721 = vsyncpa [#allocation6], 1

</llo_original>
